<compile_context>
chip_gen: v7x
topology: tpu7x:2x2x1
jax: 0.10.0
libtpu: 0.0.40
codegen_flags: <defaults>
</compile_context>

<pallas_src>
import functools

import jax
import jax.numpy as jnp
import numpy as np
from jax.experimental import pallas as pl
from jax.experimental.pallas import tpu as pltpu

LANES = 128
BLOCK_ROWS_MAX = 1024      # 1024x128 rows/step amortizes pipeline overhead
BLOCK_ROWS_MIN = 256       # below this the per-step overhead dominates
MIN_GRID_STEPS = 4         # keep >= 2 steps per TensorCore on v7x
N_FEAT = 11                # qi, qj, v_xyz, mu_i_xyz, mu_j_xyz
FEAT_DTYPE = jnp.bfloat16  # non-distance planes travel in bf16

KEHALF = 7.199822675975274  # default-unit conversion factors are all 1.0


def _round_up(x, m):
    return ((x + m - 1) // m) * m


def _pair_energy_kernel(d_ref, feat_ref, e_ref, *, cutoff, inv_cutoff,
                        inv_cutoff_sr, inv_cut2, inv_cut3, inv_cut4, kehalf):
    # feat planes: 0:qi 1:qj 2..4:v_xyz 5..7:mu_i_xyz 8..10:mu_j_xyz (bf16)
    f32 = jnp.float32
    d = d_ref[...]
    inv_d = 1.0 / d                      # exact EUP divide (padding d > 0)

    # ---- dipole/vector part first: frees 9 of the 11 feature planes early
    cvx = feat_ref[2].astype(f32) * inv_d
    cvy = feat_ref[3].astype(f32) * inv_d
    cvz = feat_ref[4].astype(f32) * inv_d
    dix = feat_ref[5].astype(f32)
    diy = feat_ref[6].astype(f32)
    diz = feat_ref[7].astype(f32)
    djx = feat_ref[8].astype(f32)
    djy = feat_ref[9].astype(f32)
    djz = feat_ref[10].astype(f32)

    dot_ij = cvx * djx + cvy * djy + cvz * djz
    dot_ji = cvx * dix + cvy * diy + cvz * diz
    dip_dot = dix * djx + diy * djy + diz * djz

    qi = feat_ref[0].astype(f32)
    qj = feat_ref[1].astype(f32)

    # ---- damped Coulomb kernel chi (reference form, no cancellation)
    e_damped = jax.lax.rsqrt(d * d + 1.0)        # 1 / sqrt(d^2 + 1)

    # Poly6 switch function (1 at d=0 -> 0 at d=cutoff_short_range)
    x = d * inv_cutoff_sr
    x3 = x * x * x
    x4 = x3 * x
    x5 = x4 * x
    sw = jnp.where(x < 1.0, 1.0 - 6.0 * x5 + 15.0 * x4 - 10.0 * x3, 0.0)
    chi = sw * e_damped + (1.0 - sw) * inv_d

    chi2 = chi * chi
    chi3 = chi2 * chi

    # shifted-force truncation ('force'): constants precomputed in Python
    chi_shift = 2.0 * inv_cutoff - d * inv_cut2
    chi2_shift = 3.0 * inv_cut2 - 2.0 * d * inv_cut3
    chi3_shift = 4.0 * inv_cut3 - 3.0 * d * inv_cut4

    E = qi * qj * (chi - chi_shift)
    E = E + 2.0 * qi * dot_ij * (chi2 - chi2_shift)
    E = E + (dip_dot - 3.0 * dot_ij * dot_ji) * (chi3 - chi3_shift)
    E = kehalf * E

    # zero out pairs beyond the interaction cutoff (also kills padding,
    # since padded distances are 2*cutoff)
    e_ref[...] = jnp.where(d <= cutoff, E, jnp.zeros_like(E))


@functools.partial(jax.jit,
                   static_argnames=("cutoff", "cutoff_short_range", "kehalf"))
def pc_dipole_damped_electrostatics(atomic_charges, atomic_dipoles,
                                    distances, idx_i, idx_j, vectors, *,
                                    cutoff, cutoff_short_range,
                                    kehalf=KEHALF):
    """JAX/Pallas equivalent of PC_Dipole_damped_electrostatics.forward
    (truncation='force', Poly6 switch)."""
    n_atoms = atomic_charges.shape[0]
    n_pairs = distances.shape[0]

    # --- glue: gather per-pair atom features in 2 passes ------------------
    # TODO(synk): data-dependent gather stays in JAX; in-kernel gather would
    # push the cost onto the XLU.
    atomic_feat = jnp.concatenate(
        [atomic_charges[:, None], atomic_dipoles], axis=1
    ).astype(jnp.float32)                                   # (n_atoms, 4)
    feat_i = atomic_feat[idx_i]                             # (n_pairs, 4)
    feat_j = atomic_feat[idx_j]

    # --- tiling ------------------------------------------------------------
    rows_needed = max(1, pl.cdiv(n_pairs, LANES))
    n_blocks_floor = max(pl.cdiv(rows_needed, BLOCK_ROWS_MAX), 1)
    n_blocks_cap = max(pl.cdiv(rows_needed, BLOCK_ROWS_MIN), 1)
    n_blocks = min(max(n_blocks_floor, MIN_GRID_STEPS), n_blocks_cap)
    block_rows = _round_up(pl.cdiv(rows_needed, n_blocks), 16)
    rows = n_blocks * block_rows
    n_pad_total = rows * LANES
    pad = n_pad_total - n_pairs

    # --- pack planes: pad each 1-D source BEFORE stacking so XLA fuses the
    # gather -> pad -> cast -> stack into a single pass over HBM.
    d_planes = jnp.pad(
        distances.astype(jnp.float32), (0, pad),
        constant_values=2.0 * float(cutoff)).reshape(rows, LANES)

    def col(x):
        return jnp.pad(x.astype(jnp.float32), (0, pad)).astype(FEAT_DTYPE)

    feat_planes = jnp.stack([
        col(feat_i[:, 0]), col(feat_j[:, 0]),               # q_i, q_j
        col(vectors[:, 0]), col(vectors[:, 1]), col(vectors[:, 2]),
        col(feat_i[:, 1]), col(feat_i[:, 2]), col(feat_i[:, 3]),   # mu_i
        col(feat_j[:, 1]), col(feat_j[:, 2]), col(feat_j[:, 3]),   # mu_j
    ], axis=0).reshape(N_FEAT, rows, LANES)

    # --- kernel launch -------------------------------------------------------
    cut2 = float(cutoff) ** 2
    cut3 = cut2 * float(cutoff)
    cut4 = cut2 * cut2

    kernel = functools.partial(
        _pair_energy_kernel,
        cutoff=float(cutoff),
        inv_cutoff=1.0 / float(cutoff),
        inv_cutoff_sr=1.0 / float(cutoff_short_range),
        inv_cut2=1.0 / cut2,
        inv_cut3=1.0 / cut3,
        inv_cut4=1.0 / cut4,
        kehalf=float(kehalf),
    )

    feat_itemsize = jnp.dtype(FEAT_DTYPE).itemsize
    block_in_bytes = block_rows * LANES * (4 + N_FEAT * feat_itemsize)
    block_out_bytes = block_rows * LANES * 4
    vmem_limit = int(min(48 << 20,
                         max(16 << 20, 4 * (block_in_bytes + block_out_bytes))))

    cost = pl.CostEstimate(
        flops=48 * n_pad_total,
        transcendentals=2 * n_pad_total,
        bytes_accessed=(4 + N_FEAT * feat_itemsize + 4) * n_pad_total,
    )

    E_tiles = pl.pallas_call(
        kernel,
        out_shape=jax.ShapeDtypeStruct((rows, LANES), jnp.float32),
        grid_spec=pltpu.PrefetchScalarGridSpec(
            num_scalar_prefetch=0,
            grid=(n_blocks,),
            in_specs=[
                pl.BlockSpec((block_rows, LANES), lambda i: (i, 0)),
                pl.BlockSpec((N_FEAT, block_rows, LANES), lambda i: (0, i, 0)),
            ],
            out_specs=pl.BlockSpec((block_rows, LANES), lambda i: (i, 0)),
        ),
        compiler_params=pltpu.CompilerParams(
            dimension_semantics=("parallel",),
            vmem_limit_bytes=vmem_limit,
        ),
        cost_estimate=cost,
    )(d_planes, feat_planes)

    E = E_tiles.reshape(-1)[:n_pairs]

    # scatter_sum over first-atom index -> per-atom energy contributions
    # TODO(synk): data-dependent scatter stays in JAX (segment_sum) rather
    # than an in-kernel one-hot reduction.
    return jax.ops.segment_sum(E, idx_i, num_segments=n_atoms)


def _reference(atomic_charges, atomic_dipoles, distances, idx_i, idx_j,
               vectors, *, cutoff, cutoff_short_range, kehalf=KEHALF):
    """Pure-JAX reference mirroring the PyTorch module (truncation='force')."""
    qi = atomic_charges[idx_i]
    qj = atomic_charges[idx_j]
    di = atomic_dipoles[idx_i]
    dj = atomic_dipoles[idx_j]

    d_damped = jnp.sqrt(distances ** 2 + 1.0)
    x = distances / cutoff_short_range
    sw = jnp.where(x < 1.0,
                   1.0 - 6.0 * x ** 5 + 15.0 * x ** 4 - 10.0 * x ** 3, 0.0)
    sw_o = 1.0 - sw

    chi = sw / d_damped + sw_o / distances
    cut2 = cutoff ** 2
    cut3 = cut2 * cutoff
    cut4 = cut2 * cut2
    chi_shift = 2.0 / cutoff - distances / cut2
    E = qi * qj * (chi - chi_shift)

    chi2 = chi ** 2
    chi3 = chi2 * chi
    chi2_shift = 3.0 / cut2 - 2.0 * distances / cut3
    chi3_shift = 4.0 / cut3 - 3.0 * distances / cut4
    chi_vectors = vectors / distances[:, None]
    dot_ij = jnp.sum(chi_vectors * dj, axis=1)
    dot_ji = jnp.sum(chi_vectors * di, axis=1)
    E = E + 2.0 * qi * dot_ij * (chi2 - chi2_shift)
    E = E + (jnp.sum(di * dj, axis=1) - 3.0 * dot_ij * dot_ji) \
        * (chi3 - chi3_shift)
    E = kehalf * E
    E = jnp.where(distances <= cutoff, E, jnp.zeros_like(E))
    return jax.ops.segment_sum(E, idx_i,
                               num_segments=atomic_charges.shape[0])


def _bf16_exact(x):
    """Round to the nearest bf16-representable f32 (keeps the bf16 planes of
    the kernel lossless so the test can compare at f32 precision)."""
    return x.astype(jnp.bfloat16).astype(jnp.float32)


if __name__ == "__main__":
    key = jax.random.PRNGKey(0)
    k1, k2, k3, k4, k5 = jax.random.split(key, 5)

    n_atoms = 16
    n_pairs = 64
    cutoff = 4.0
    cutoff_short_range = 2.0

    # deterministic synthetic inputs (bf16-representable charge/dipole/vector
    # values so the kernel's bf16 feature planes introduce no quantization
    # error relative to the f32 reference)
    atomic_charges = jax.random.normal(k1, (n_atoms,), dtype=jnp.float32)
    atomic_charges = _bf16_exact(atomic_charges - jnp.mean(atomic_charges))
    atomic_dipoles = _bf16_exact(
        0.1 * jax.random.normal(k2, (n_atoms, 3), dtype=jnp.float32))
    positions = 3.0 * jax.random.uniform(k3, (n_atoms, 3), dtype=jnp.float32)

    idx_i = jax.random.randint(k4, (n_pairs,), 0, n_atoms, dtype=jnp.int32)
    offs = jax.random.randint(k5, (n_pairs,), 1, n_atoms, dtype=jnp.int32)
    idx_j = (idx_i + offs) % n_atoms  # guarantee i != j

    vectors = _bf16_exact(positions[idx_j] - positions[idx_i])
    distances = jnp.sqrt(jnp.sum(vectors ** 2, axis=1))

    out = pc_dipole_damped_electrostatics(
        atomic_charges, atomic_dipoles, distances, idx_i, idx_j, vectors,
        cutoff=cutoff, cutoff_short_range=cutoff_short_range)
    out = jax.block_until_ready(out)

    ref = _reference(
        atomic_charges, atomic_dipoles, distances, idx_i, idx_j, vectors,
        cutoff=cutoff, cutoff_short_range=cutoff_short_range)
    ref = jax.block_until_ready(ref)

    np.testing.assert_allclose(np.asarray(out), np.asarray(ref),
                               rtol=2e-5, atol=2e-5)
    print("KERNEL_OK")
</pallas_src>

<mosaic_0001>
module attributes {stable_mosaic.version = 11 : i64} {
  func.func private @main(%arg0: i32) attributes {dimension_semantics = [#tpu.dimension_semantics<core_parallel>], iteration_bounds = array<i64: 2>, tpu.core_type = #tpu.core_type<sc_scalar_subcore>, window_params = []} {
    return
  }
}

module attributes {stable_mosaic.version = 11 : i64} {
  func.func private @main(%arg0: i32) attributes {dimension_semantics = [#tpu.dimension_semantics<core_parallel>], iteration_bounds = array<i64: 2>, tpu.core_type = #tpu.core_type<sc_scalar_subcore>, window_params = []} {
    return
  }
}

module attributes {stable_mosaic.version = 11 : i64} {
  func.func @_pair_energy_kernel(%arg0: i32, %arg1: memref<16x128xf32, #tpu.memory_space<vmem>>, %arg2: memref<11x16x128xbf16, #tpu.memory_space<vmem>>, %arg3: memref<16x128xf32, #tpu.memory_space<vmem>>) attributes {dimension_semantics = [#tpu.dimension_semantics<parallel>], iteration_bounds = array<i64: 1>, scalar_prefetch = 0 : i64, scratch_operands = 0 : i64, tpu.core_type = #tpu.core_type<tc>, window_params = [{transform_indices = @transform_0, window_bounds = array<i64: 16, 128>}, {transform_indices = @transform_1, window_bounds = array<i64: 11, 16, 128>}, {transform_indices = @transform_2, window_bounds = array<i64: 16, 128>}]} {
    %c0 = arith.constant 0 : index
    %c0_0 = arith.constant 0 : index
    %0 = vector.load %arg1[%c0, %c0_0] : memref<16x128xf32, #tpu.memory_space<vmem>>, vector<16x128xf32>
    %cst = arith.constant 1.000000e+00 : f32
    %1 = vector.broadcast %cst : f32 to vector<16x128xf32>
    %2 = arith.divf %1, %0 : vector<16x128xf32>
    %c2 = arith.constant 2 : index
    %c0_1 = arith.constant 0 : index
    %c0_2 = arith.constant 0 : index
    %3 = vector.load %arg2[%c2, %c0_1, %c0_2] : memref<11x16x128xbf16, #tpu.memory_space<vmem>>, vector<1x16x128xbf16>
    %4 = vector.shape_cast %3 : vector<1x16x128xbf16> to vector<16x128xbf16>
    %5 = arith.extf %4 : vector<16x128xbf16> to vector<16x128xf32>
    %6 = arith.mulf %5, %2 : vector<16x128xf32>
    %c3 = arith.constant 3 : index
    %c0_3 = arith.constant 0 : index
    %c0_4 = arith.constant 0 : index
    %7 = vector.load %arg2[%c3, %c0_3, %c0_4] : memref<11x16x128xbf16, #tpu.memory_space<vmem>>, vector<1x16x128xbf16>
    %8 = vector.shape_cast %7 : vector<1x16x128xbf16> to vector<16x128xbf16>
    %9 = arith.extf %8 : vector<16x128xbf16> to vector<16x128xf32>
    %10 = arith.mulf %9, %2 : vector<16x128xf32>
    %c4 = arith.constant 4 : index
    %c0_5 = arith.constant 0 : index
    %c0_6 = arith.constant 0 : index
    %11 = vector.load %arg2[%c4, %c0_5, %c0_6] : memref<11x16x128xbf16, #tpu.memory_space<vmem>>, vector<1x16x128xbf16>
    %12 = vector.shape_cast %11 : vector<1x16x128xbf16> to vector<16x128xbf16>
    %13 = arith.extf %12 : vector<16x128xbf16> to vector<16x128xf32>
    %14 = arith.mulf %13, %2 : vector<16x128xf32>
    %c5 = arith.constant 5 : index
    %c0_7 = arith.constant 0 : index
    %c0_8 = arith.constant 0 : index
    %15 = vector.load %arg2[%c5, %c0_7, %c0_8] : memref<11x16x128xbf16, #tpu.memory_space<vmem>>, vector<1x16x128xbf16>
    %16 = vector.shape_cast %15 : vector<1x16x128xbf16> to vector<16x128xbf16>
    %17 = arith.extf %16 : vector<16x128xbf16> to vector<16x128xf32>
    %c6 = arith.constant 6 : index
    %c0_9 = arith.constant 0 : index
    %c0_10 = arith.constant 0 : index
    %18 = vector.load %arg2[%c6, %c0_9, %c0_10] : memref<11x16x128xbf16, #tpu.memory_space<vmem>>, vector<1x16x128xbf16>
    %19 = vector.shape_cast %18 : vector<1x16x128xbf16> to vector<16x128xbf16>
    %20 = arith.extf %19 : vector<16x128xbf16> to vector<16x128xf32>
    %c7 = arith.constant 7 : index
    %c0_11 = arith.constant 0 : index
    %c0_12 = arith.constant 0 : index
    %21 = vector.load %arg2[%c7, %c0_11, %c0_12] : memref<11x16x128xbf16, #tpu.memory_space<vmem>>, vector<1x16x128xbf16>
    %22 = vector.shape_cast %21 : vector<1x16x128xbf16> to vector<16x128xbf16>
    %23 = arith.extf %22 : vector<16x128xbf16> to vector<16x128xf32>
    %c8 = arith.constant 8 : index
    %c0_13 = arith.constant 0 : index
    %c0_14 = arith.constant 0 : index
    %24 = vector.load %arg2[%c8, %c0_13, %c0_14] : memref<11x16x128xbf16, #tpu.memory_space<vmem>>, vector<1x16x128xbf16>
    %25 = vector.shape_cast %24 : vector<1x16x128xbf16> to vector<16x128xbf16>
    %26 = arith.extf %25 : vector<16x128xbf16> to vector<16x128xf32>
    %c9 = arith.constant 9 : index
    %c0_15 = arith.constant 0 : index
    %c0_16 = arith.constant 0 : index
    %27 = vector.load %arg2[%c9, %c0_15, %c0_16] : memref<11x16x128xbf16, #tpu.memory_space<vmem>>, vector<1x16x128xbf16>
    %28 = vector.shape_cast %27 : vector<1x16x128xbf16> to vector<16x128xbf16>
    %29 = arith.extf %28 : vector<16x128xbf16> to vector<16x128xf32>
    %c10 = arith.constant 10 : index
    %c0_17 = arith.constant 0 : index
    %c0_18 = arith.constant 0 : index
    %30 = vector.load %arg2[%c10, %c0_17, %c0_18] : memref<11x16x128xbf16, #tpu.memory_space<vmem>>, vector<1x16x128xbf16>
    %31 = vector.shape_cast %30 : vector<1x16x128xbf16> to vector<16x128xbf16>
    %32 = arith.extf %31 : vector<16x128xbf16> to vector<16x128xf32>
    %33 = arith.mulf %6, %26 : vector<16x128xf32>
    %34 = arith.mulf %10, %29 : vector<16x128xf32>
    %35 = arith.addf %33, %34 : vector<16x128xf32>
    %36 = arith.mulf %14, %32 : vector<16x128xf32>
    %37 = arith.addf %35, %36 : vector<16x128xf32>
    %38 = arith.mulf %6, %17 : vector<16x128xf32>
    %39 = arith.mulf %10, %20 : vector<16x128xf32>
    %40 = arith.addf %38, %39 : vector<16x128xf32>
    %41 = arith.mulf %14, %23 : vector<16x128xf32>
    %42 = arith.addf %40, %41 : vector<16x128xf32>
    %43 = arith.mulf %17, %26 : vector<16x128xf32>
    %44 = arith.mulf %20, %29 : vector<16x128xf32>
    %45 = arith.addf %43, %44 : vector<16x128xf32>
    %46 = arith.mulf %23, %32 : vector<16x128xf32>
    %47 = arith.addf %45, %46 : vector<16x128xf32>
    %c0_19 = arith.constant 0 : index
    %c0_20 = arith.constant 0 : index
    %c0_21 = arith.constant 0 : index
    %48 = vector.load %arg2[%c0_19, %c0_20, %c0_21] : memref<11x16x128xbf16, #tpu.memory_space<vmem>>, vector<1x16x128xbf16>
    %49 = vector.shape_cast %48 : vector<1x16x128xbf16> to vector<16x128xbf16>
    %50 = arith.extf %49 : vector<16x128xbf16> to vector<16x128xf32>
    %c1 = arith.constant 1 : index
    %c0_22 = arith.constant 0 : index
    %c0_23 = arith.constant 0 : index
    %51 = vector.load %arg2[%c1, %c0_22, %c0_23] : memref<11x16x128xbf16, #tpu.memory_space<vmem>>, vector<1x16x128xbf16>
    %52 = vector.shape_cast %51 : vector<1x16x128xbf16> to vector<16x128xbf16>
    %53 = arith.extf %52 : vector<16x128xbf16> to vector<16x128xf32>
    %54 = arith.mulf %0, %0 : vector<16x128xf32>
    %cst_24 = arith.constant 1.000000e+00 : f32
    %55 = vector.broadcast %cst_24 : f32 to vector<16x128xf32>
    %56 = arith.addf %54, %55 : vector<16x128xf32>
    %57 = math.rsqrt %56 : vector<16x128xf32>
    %cst_25 = arith.constant 5.000000e-01 : f32
    %58 = vector.broadcast %cst_25 : f32 to vector<16x128xf32>
    %59 = arith.mulf %0, %58 : vector<16x128xf32>
    %60 = arith.mulf %59, %59 : vector<16x128xf32>
    %61 = arith.mulf %60, %59 : vector<16x128xf32>
    %62 = arith.mulf %61, %59 : vector<16x128xf32>
    %63 = arith.mulf %62, %59 : vector<16x128xf32>
    %cst_26 = arith.constant 1.000000e+00 : f32
    %64 = vector.broadcast %cst_26 : f32 to vector<16x128xf32>
    %65 = arith.cmpf olt, %59, %64 : vector<16x128xf32>
    %cst_27 = arith.constant 6.000000e+00 : f32
    %66 = vector.broadcast %cst_27 : f32 to vector<16x128xf32>
    %67 = arith.mulf %66, %63 : vector<16x128xf32>
    %cst_28 = arith.constant 1.000000e+00 : f32
    %68 = vector.broadcast %cst_28 : f32 to vector<16x128xf32>
    %69 = arith.subf %68, %67 : vector<16x128xf32>
    %cst_29 = arith.constant 1.500000e+01 : f32
    %70 = vector.broadcast %cst_29 : f32 to vector<16x128xf32>
    %71 = arith.mulf %70, %62 : vector<16x128xf32>
    %72 = arith.addf %69, %71 : vector<16x128xf32>
    %cst_30 = arith.constant 1.000000e+01 : f32
    %73 = vector.broadcast %cst_30 : f32 to vector<16x128xf32>
    %74 = arith.mulf %73, %61 : vector<16x128xf32>
    %75 = arith.subf %72, %74 : vector<16x128xf32>
    %cst_31 = arith.constant 0.000000e+00 : f32
    %76 = vector.broadcast %cst_31 : f32 to vector<16x128xf32>
    %77 = arith.select %65, %75, %76 : vector<16x128xi1>, vector<16x128xf32>
    %78 = arith.mulf %77, %57 : vector<16x128xf32>
    %cst_32 = arith.constant 1.000000e+00 : f32
    %79 = vector.broadcast %cst_32 : f32 to vector<16x128xf32>
    %80 = arith.subf %79, %77 : vector<16x128xf32>
    %81 = arith.mulf %80, %2 : vector<16x128xf32>
    %82 = arith.addf %78, %81 : vector<16x128xf32>
    %83 = arith.mulf %82, %82 : vector<16x128xf32>
    %84 = arith.mulf %83, %82 : vector<16x128xf32>
    %cst_33 = arith.constant 6.250000e-02 : f32
    %85 = vector.broadcast %cst_33 : f32 to vector<16x128xf32>
    %86 = arith.mulf %0, %85 : vector<16x128xf32>
    %cst_34 = arith.constant 5.000000e-01 : f32
    %87 = vector.broadcast %cst_34 : f32 to vector<16x128xf32>
    %88 = arith.subf %87, %86 : vector<16x128xf32>
    %cst_35 = arith.constant 2.000000e+00 : f32
    %89 = vector.broadcast %cst_35 : f32 to vector<16x128xf32>
    %90 = arith.mulf %89, %0 : vector<16x128xf32>
    %cst_36 = arith.constant 1.562500e-02 : f32
    %91 = vector.broadcast %cst_36 : f32 to vector<16x128xf32>
    %92 = arith.mulf %90, %91 : vector<16x128xf32>
    %cst_37 = arith.constant 1.875000e-01 : f32
    %93 = vector.broadcast %cst_37 : f32 to vector<16x128xf32>
    %94 = arith.subf %93, %92 : vector<16x128xf32>
    %cst_38 = arith.constant 3.000000e+00 : f32
    %95 = vector.broadcast %cst_38 : f32 to vector<16x128xf32>
    %96 = arith.mulf %95, %0 : vector<16x128xf32>
    %cst_39 = arith.constant 3.906250e-03 : f32
    %97 = vector.broadcast %cst_39 : f32 to vector<16x128xf32>
    %98 = arith.mulf %96, %97 : vector<16x128xf32>
    %cst_40 = arith.constant 6.250000e-02 : f32
    %99 = vector.broadcast %cst_40 : f32 to vector<16x128xf32>
    %100 = arith.subf %99, %98 : vector<16x128xf32>
    %101 = arith.mulf %50, %53 : vector<16x128xf32>
    %102 = arith.subf %82, %88 : vector<16x128xf32>
    %103 = arith.mulf %101, %102 : vector<16x128xf32>
    %cst_41 = arith.constant 2.000000e+00 : f32
    %104 = vector.broadcast %cst_41 : f32 to vector<16x128xf32>
    %105 = arith.mulf %104, %50 : vector<16x128xf32>
    %106 = arith.mulf %105, %37 : vector<16x128xf32>
    %107 = arith.subf %83, %94 : vector<16x128xf32>
    %108 = arith.mulf %106, %107 : vector<16x128xf32>
    %109 = arith.addf %103, %108 : vector<16x128xf32>
    %cst_42 = arith.constant 3.000000e+00 : f32
    %110 = vector.broadcast %cst_42 : f32 to vector<16x128xf32>
    %111 = arith.mulf %110, %37 : vector<16x128xf32>
    %112 = arith.mulf %111, %42 : vector<16x128xf32>
    %113 = arith.subf %47, %112 : vector<16x128xf32>
    %114 = arith.subf %84, %100 : vector<16x128xf32>
    %115 = arith.mulf %113, %114 : vector<16x128xf32>
    %116 = arith.addf %109, %115 : vector<16x128xf32>
    %cst_43 = arith.constant 7.1998229 : f32
    %117 = vector.broadcast %cst_43 : f32 to vector<16x128xf32>
    %118 = arith.mulf %117, %116 : vector<16x128xf32>
    %cst_44 = arith.constant 4.000000e+00 : f32
    %119 = vector.broadcast %cst_44 : f32 to vector<16x128xf32>
    %120 = arith.cmpf ole, %0, %119 : vector<16x128xf32>
    %cst_45 = arith.constant 0.000000e+00 : f32
    %121 = vector.broadcast %cst_45 : f32 to vector<16x128xf32>
    %122 = arith.select %120, %118, %121 : vector<16x128xi1>, vector<16x128xf32>
    %c0_46 = arith.constant 0 : index
    %c0_47 = arith.constant 0 : index
    %123 = vector.load %arg3[%c0_46, %c0_47] : memref<16x128xf32, #tpu.memory_space<vmem>>, vector<16x128xf32>
    tpu.vector_store %arg3[%c0_46, %c0_47], %122 {strides = array<i32>} : memref<16x128xf32, #tpu.memory_space<vmem>>, vector<16x128xf32>,
    return
  }
  func.func @transform_0(%arg0: i32) -> (i32, i32) {
    %c0_i32 = arith.constant 0 : i32
    %c0_i32_0 = arith.constant 0 : i32
    return %arg0, %c0_i32 : i32, i32
  }
  func.func @transform_1(%arg0: i32) -> (i32, i32, i32) {
    %c0_i32 = arith.constant 0 : i32
    %c0_i32_0 = arith.constant 0 : i32
    %c0_i32_1 = arith.constant 0 : i32
    return %c0_i32, %arg0, %c0_i32_0 : i32, i32, i32
  }
  func.func @transform_2(%arg0: i32) -> (i32, i32) {
    %c0_i32 = arith.constant 0 : i32
    %c0_i32_0 = arith.constant 0 : i32
    return %arg0, %c0_i32 : i32, i32
  }
}

</mosaic_0001>

<llo_original>
// kernel: pc_dipole_damped_electrostatics.1
$region0: #{pc_dipole_damped_electrostatics.1}
  #allocation0 [shape = 'u32[]', space=smem, size = 0x4, offset = 0x4, fixed_abs, tag = 'smem constant byte address 0x4 - core index']
  #allocation1 [shape = 'u32[144,128]{1,0:T(1,128)}', space=vmem, size = 0x12000, scoped, tag = 'internal scratch']
  %s0 = inlined_call_operand.vmem [shape: f32[16,128], index: 0, kind: input, shape index: {}]
  %s1 = inlined_call_operand.vmem [shape: bf16[11,16,128], index: 1, kind: input, shape index: {}]
  %s2 = inlined_call_operand.vmem [shape: f32[16,128], index: 2, kind: output, shape index: {}]
  %s3 = sld [smem:[#allocation0]]
  $region18: #{pc_dipole_damped_electrostatics.1} parent=0
    _
  %s5 = ssub.s32 1, %s3
  %s6 = scalar_select 0, %s5, %s3
  // Predicated region
  $region2: #{pc_dipole_damped_electrostatics.1} parent=0 // pred_check
    _
  $region3: #{pc_dipole_damped_electrostatics.1} parent=0 // pred_check_branch
    %8 = sbr.rel (0) target = $region5
  $region4: #{pc_dipole_damped_electrostatics.1} parent=0 // pred_region
    _
  $region5: #{pc_dipole_damped_electrostatics.1} parent=0 // pred_fallthru
    _
  // Predicated region
  $region6: #{pc_dipole_damped_electrostatics.1} parent=0 // pred_check
    _
  $region7: #{pc_dipole_damped_electrostatics.1} parent=0 // pred_check_branch
    %10 = sbr.rel (0) target = $region9
  $region8: #{pc_dipole_damped_electrostatics.1} parent=0 // pred_region
    _
  $region9: #{pc_dipole_damped_electrostatics.1} parent=0 // pred_fallthru
    _
  %v11 = vld [vmem:[%s0] sm:$0xff]
  %v12 = vld [vmem:[%s0 + $0x8] sm:$0xff]
  %v13 = vrcp.pop %v11
  %v14 = vmul.f32 1.0, %v13
  %v15 = vrcp.pop %v12
  %v16 = vmul.f32 1.0, %v15
  %s17 = scalar_lea.vmem %s1, 16
  %v18 = vld [vmem:[%s17] sm:$0xf]
  %v19 = vld [vmem:[%s17 + $0x4] sm:$0xf]
  %v20 = vunpack.c.l.bf16 %v18
  %v21 = vunpack.c.l.bf16 %v19
  %v22 = vmul.f32 %v20, %v14
  %v23 = vmul.f32 %v21, %v16
  %s24 = scalar_lea.vmem %s1, 24
  %v25 = vld [vmem:[%s24] sm:$0xf]
  %v26 = vld [vmem:[%s24 + $0x4] sm:$0xf]
  %v27 = vunpack.c.l.bf16 %v25
  %v28 = vunpack.c.l.bf16 %v26
  %v29 = vmul.f32 %v27, %v14
  %v30 = vmul.f32 %v28, %v16
  %s31 = scalar_lea.vmem %s1, 32
  %v32 = vld [vmem:[%s31] sm:$0xf]
  %v33 = vld [vmem:[%s31 + $0x4] sm:$0xf]
  %v34 = vunpack.c.l.bf16 %v32
  %v35 = vunpack.c.l.bf16 %v33
  %v36 = vmul.f32 %v34, %v14
  %v37 = vmul.f32 %v35, %v16
  %s38 = scalar_lea.vmem %s1, 40
  %v39 = vld [vmem:[%s38] sm:$0xf]
  %v40 = vld [vmem:[%s38 + $0x4] sm:$0xf]
  %v41 = vunpack.c.l.bf16 %v39
  %v42 = vunpack.c.l.bf16 %v40
  %s43 = scalar_lea.vmem %s1, 48
  %v44 = vld [vmem:[%s43] sm:$0xf]
  %v45 = vld [vmem:[%s43 + $0x4] sm:$0xf]
  %v46 = vunpack.c.l.bf16 %v44
  %v47 = vunpack.c.l.bf16 %v45
  %s48 = scalar_lea.vmem %s1, 56
  %v49 = vld [vmem:[%s48] sm:$0xf]
  %v50 = vld [vmem:[%s48 + $0x4] sm:$0xf]
  %v51 = vunpack.c.l.bf16 %v49
  %v52 = vunpack.c.l.bf16 %v50
  %s53 = scalar_lea.vmem %s1, 64
  %v54 = vld [vmem:[%s53] sm:$0xf]
  %v55 = vld [vmem:[%s53 + $0x4] sm:$0xf]
  %v56 = vunpack.c.l.bf16 %v54
  %v57 = vunpack.c.l.bf16 %v55
  %s58 = scalar_lea.vmem %s1, 72
  %v59 = vld [vmem:[%s58] sm:$0xf]
  %v60 = vld [vmem:[%s58 + $0x4] sm:$0xf]
  %v61 = vunpack.c.l.bf16 %v59
  %v62 = vunpack.c.l.bf16 %v60
  %s63 = scalar_lea.vmem %s1, 80
  %v64 = vld [vmem:[%s63] sm:$0xf]
  %v65 = vld [vmem:[%s63 + $0x4] sm:$0xf]
  %v66 = vunpack.c.l.bf16 %v64
  %v67 = vunpack.c.l.bf16 %v65
  %v68 = vmul.f32 %v22, %v56
  %v69 = vmul.f32 %v23, %v57
  %v70 = vmul.f32 %v29, %v61
  %v71 = vmul.f32 %v30, %v62
  %v72 = vadd.f32 %v68, %v70
  %v73 = vadd.f32 %v69, %v71
  %v74 = vmul.f32 %v36, %v66
  %v75 = vmul.f32 %v37, %v67
  %v76 = vadd.f32 %v72, %v74
  %v77 = vadd.f32 %v73, %v75
  %v78 = vmul.f32 %v22, %v41
  %v79 = vmul.f32 %v23, %v42
  %v80 = vmul.f32 %v29, %v46
  %v81 = vmul.f32 %v30, %v47
  %v82 = vadd.f32 %v78, %v80
  %v83 = vadd.f32 %v79, %v81
  %v84 = vmul.f32 %v36, %v51
  %v85 = vmul.f32 %v37, %v52
  %v86 = vadd.f32 %v82, %v84
  %v87 = vadd.f32 %v83, %v85
  %v88 = vmul.f32 %v41, %v56
  %v89 = vmul.f32 %v42, %v57
  %v90 = vmul.f32 %v46, %v61
  %v91 = vmul.f32 %v47, %v62
  %v92 = vadd.f32 %v88, %v90
  %v93 = vadd.f32 %v89, %v91
  %v94 = vmul.f32 %v51, %v66
  %v95 = vmul.f32 %v52, %v67
  %v96 = vadd.f32 %v92, %v94
  %v97 = vadd.f32 %v93, %v95
  %v98 = vld [vmem:[%s1] sm:$0xf]
  %v99 = vld [vmem:[%s1 + $0x4] sm:$0xf]
  %v100 = vunpack.c.l.bf16 %v98
  %v101 = vunpack.c.l.bf16 %v99
  %s102 = scalar_lea.vmem %s1, 8
  %v103 = vld [vmem:[%s102] sm:$0xf]
  %v104 = vld [vmem:[%s102 + $0x4] sm:$0xf]
  %v105 = vunpack.c.l.bf16 %v103
  %v106 = vunpack.c.l.bf16 %v104
  %v107 = vmul.f32 %v11, %v11
  %v108 = vmul.f32 %v12, %v12
  %v109 = vadd.f32 %v107, 1.0
  %v110 = vadd.f32 %v108, 1.0
  %v111 = vrsqrt.pop %v109
  %v112 = vrsqrt.pop %v110
  %v113 = vmul.f32 %v11, 0.5
  %v114 = vmul.f32 %v12, 0.5
  %v115 = vmul.f32 %v113, %v113
  %v116 = vmul.f32 %v114, %v114
  %v117 = vmul.f32 %v115, %v113
  %v118 = vmul.f32 %v116, %v114
  %v119 = vmul.f32 %v117, %v113
  %v120 = vmul.f32 %v118, %v114
  %v121 = vmul.f32 %v119, %v113
  %v122 = vmul.f32 %v120, %v114
  %vm123 = vcmp.lt.f32.partialorder %v113, 1.0
  %vm124 = vcmp.lt.f32.partialorder %v114, 1.0
  %v125 = vmul.f32 %v121, 6.0
  %v126 = vmul.f32 %v122, 6.0
  %v127 = vsub.f32 1.0, %v125
  %v128 = vsub.f32 1.0, %v126
  %v129 = vmul.f32 %v119, 15.0
  %v130 = vmul.f32 %v120, 15.0
  %v131 = vadd.f32 %v127, %v129
  %v132 = vadd.f32 %v128, %v130
  %v133 = vmul.f32 %v117, 10.0
  %v134 = vmul.f32 %v118, 10.0
  %v135 = vsub.f32 %v131, %v133
  %v136 = vsub.f32 %v132, %v134
  %v137 = vsel %vm123, %v135, 0.0
  %v138 = vsel %vm124, %v136, 0.0
  %v139 = vmul.f32 %v137, %v111
  %v140 = vmul.f32 %v138, %v112
  %v141 = vsub.f32 1.0, %v137
  %v142 = vsub.f32 1.0, %v138
  %v143 = vmul.f32 %v141, %v14
  %v144 = vmul.f32 %v142, %v16
  %v145 = vadd.f32 %v139, %v143
  %v146 = vadd.f32 %v140, %v144
  %v147 = vmul.f32 %v145, %v145
  %v148 = vmul.f32 %v146, %v146
  %v149 = vmul.f32 %v147, %v145
  %v150 = vmul.f32 %v148, %v146
  %v151 = vmul.f32 %v11, 0.0625
  %v152 = vmul.f32 %v12, 0.0625
  %v153 = vsub.f32 0.5, %v151
  %v154 = vsub.f32 0.5, %v152
  %v155 = vmul.f32 %v11, 2.0
  %v156 = vmul.f32 %v12, 2.0
  %v157 = vmul.f32 %v155, 0.015625
  %v158 = vmul.f32 %v156, 0.015625
  %v159 = vsub.f32 0.1875, %v157
  %v160 = vsub.f32 0.1875, %v158
  %v161 = vmul.f32 %v11, 3.0
  %v162 = vmul.f32 %v12, 3.0
  %v163 = vmul.f32 %v161, 0.00390625
  %v164 = vmul.f32 %v162, 0.00390625
  %v165 = vsub.f32 0.0625, %v163
  %v166 = vsub.f32 0.0625, %v164
  %v167 = vmul.f32 %v100, %v105
  %v168 = vmul.f32 %v101, %v106
  %v169 = vsub.f32 %v145, %v153
  %v170 = vsub.f32 %v146, %v154
  %v171 = vmul.f32 %v167, %v169
  %v172 = vmul.f32 %v168, %v170
  %v173 = vmul.f32 %v100, 2.0
  %v174 = vmul.f32 %v101, 2.0
  %v175 = vmul.f32 %v173, %v76
  %v176 = vmul.f32 %v174, %v77
  %v177 = vsub.f32 %v147, %v159
  %v178 = vsub.f32 %v148, %v160
  %v179 = vmul.f32 %v175, %v177
  %v180 = vmul.f32 %v176, %v178
  %v181 = vadd.f32 %v171, %v179
  %v182 = vadd.f32 %v172, %v180
  %v183 = vmul.f32 %v76, 3.0
  %v184 = vmul.f32 %v77, 3.0
  %v185 = vmul.f32 %v183, %v86
  %v186 = vmul.f32 %v184, %v87
  %v187 = vsub.f32 %v96, %v185
  %v188 = vsub.f32 %v97, %v186
  %v189 = vsub.f32 %v149, %v165
  %v190 = vsub.f32 %v150, %v166
  %v191 = vmul.f32 %v187, %v189
  %v192 = vmul.f32 %v188, %v190
  %v193 = vadd.f32 %v181, %v191
  %v194 = vadd.f32 %v182, %v192
  %v195 = vmul.f32 %v193, 7.199823
  %v196 = vmul.f32 %v194, 7.199823
  %vm197 = vcmp.le.f32.partialorder %v11, 4.0
  %vm198 = vcmp.le.f32.partialorder %v12, 4.0
  %v199 = vsel %vm197, %v195, 0.0
  %v200 = vsel %vm198, %v196, 0.0
  %201 = vst [vmem:[%s2] sm:$0xff] %v199
  %202 = vst [vmem:[%s2 + $0x8] sm:$0xff] %v200
  // Predicated region
  $region10: #{pc_dipole_damped_electrostatics.1} parent=0 // pred_check
    _
  $region11: #{pc_dipole_damped_electrostatics.1} parent=0 // pred_check_branch
    %204 = sbr.rel (0) target = $region13
  $region12: #{pc_dipole_damped_electrostatics.1} parent=0 // pred_region
    _
  $region13: #{pc_dipole_damped_electrostatics.1} parent=0 // pred_fallthru
    _
  // Predicated region
  $region14: #{pc_dipole_damped_electrostatics.1} parent=0 // pred_check
    _
  $region15: #{pc_dipole_damped_electrostatics.1} parent=0 // pred_check_branch
    %206 = sbr.rel (0) target = $region17
  $region16: #{pc_dipole_damped_electrostatics.1} parent=0 // pred_region
    _
  $region17: #{pc_dipole_damped_electrostatics.1} parent=0 // pred_fallthru
    _

</llo_original>
